<compile_context>
chip_gen: v7x
topology: tpu7x:2x2x1
jax: 0.10.0
libtpu: 0.0.40
codegen_flags: <defaults>
</compile_context>

<pallas_src>
import functools
import math
from math import factorial as fac

import jax
import jax.numpy as jnp
import numpy as np
from jax import lax
from jax.experimental import pallas as pl
from jax.experimental.pallas import tpu as pltpu


# -----------------------------------------------------------------------------
# Real solid harmonics r^l Y_lm packed into an (L1, L1) table:
#   Y[l, l]   = m = 0 component
#   Y[l, l-m] = Re part (lower triangle, weight 2 via Yr)
#   Y[l-m, l] = Im part (upper triangle, weight 2 via Yi)
# Host (jnp) version is used only by the numpy reference; the kernel recomputes
# the same recursion in-register on (1, Nb) rows.
# -----------------------------------------------------------------------------
def ylm_solid(xyz, lmax):
    x, y, z = xyz[:, 0], xyz[:, 1], xyz[:, 2]
    r2 = x * x + y * y + z * z
    n_atoms = xyz.shape[0]
    L1 = lmax + 1
    T = [[None] * L1 for _ in range(L1)]
    T[0][0] = jnp.ones_like(x)
    for m in range(1, L1):
        T[m][m] = T[m - 1][m - 1] * (2.0 * m - 1.0)
    for m in range(0, lmax):
        T[m + 1][m] = (2.0 * m + 1.0) * z * T[m][m]
    for m in range(0, L1):
        for l in range(m + 2, L1):
            T[l][m] = ((2.0 * l - 1.0) * z * T[l - 1][m]
                       - (l + m - 1.0) * r2 * T[l - 2][m]) / (l - m)
    C = [jnp.ones_like(x)]
    Sn = [jnp.zeros_like(x)]
    for m in range(1, L1):
        C.append(C[m - 1] * x - Sn[m - 1] * y)
        Sn.append(Sn[m - 1] * x + C[m - 1] * y)
    Y = jnp.zeros((L1, L1, n_atoms), jnp.float32)
    for l in range(L1):
        for m in range(l + 1):
            nlm = math.sqrt((2 * l + 1) / (4 * math.pi) * fac(l - m) / fac(l + m))
            re = nlm * T[l][m] * C[m]
            if m == 0:
                Y = Y.at[l, l].set(re)
            else:
                im = nlm * T[l][m] * Sn[m]
                Y = Y.at[l, l - m].set(re)
                Y = Y.at[l - m, l].set(im)
    return Y


def _ylm_rows(x, y, z, lmax):
    """In-kernel Ylm: x, y, z are (1, Nb) rows; returns (L1*L1, Nb) packed table."""
    r2 = x * x + y * y + z * z
    L1 = lmax + 1
    T = [[None] * L1 for _ in range(L1)]
    T[0][0] = jnp.ones_like(x)
    for m in range(1, L1):
        T[m][m] = T[m - 1][m - 1] * (2.0 * m - 1.0)
    for m in range(0, lmax):
        T[m + 1][m] = (2.0 * m + 1.0) * z * T[m][m]
    for m in range(0, L1):
        for l in range(m + 2, L1):
            T[l][m] = ((2.0 * l - 1.0) * z * T[l - 1][m]
                       - (l + m - 1.0) * r2 * T[l - 2][m]) / (l - m)
    C = [jnp.ones_like(x)]
    Sn = [jnp.zeros_like(x)]
    for m in range(1, L1):
        C.append(C[m - 1] * x - Sn[m - 1] * y)
        Sn.append(Sn[m - 1] * x + C[m - 1] * y)
    rows = [[None] * L1 for _ in range(L1)]
    for l in range(L1):
        for m in range(l + 1):
            nlm = math.sqrt((2 * l + 1) / (4 * math.pi) * fac(l - m) / fac(l + m))
            re = nlm * T[l][m] * C[m]
            if m == 0:
                rows[l][l] = re
            else:
                im = nlm * T[l][m] * Sn[m]
                rows[l][l - m] = re
                rows[l - m][l] = im
    flat = [rows[i][j] for i in range(L1) for j in range(L1)]   # row-major (l, m)
    return jnp.concatenate(flat, axis=0)                        # (LM, Nb)


# -----------------------------------------------------------------------------
# Pallas kernel: per-atom radial/exponential + in-kernel Ylm, species-masked
# contraction (MXU) accumulated over atom tiles, then one batched power-spectrum
# dot, nnl scaling and normalization in registers, single lane-dense store.
# -----------------------------------------------------------------------------
def _sesoap_kernel(xyz_ref, units_ref, mask_ref, mt_ref, nnl_ref, out_ref, c_acc,
                   *, S, nm1, lmax, rc, normalize, eps):
    k = pl.program_id(0)

    @pl.when(k == 0)
    def _init():
        c_acc[...] = jnp.zeros_like(c_acc)

    xyz = xyz_ref[...]                                  # (3, Nb)
    x = xyz[0:1, :]
    y = xyz[1:2, :]
    z = xyz[2:3, :]
    d2 = x * x + y * y + z * z                          # (1, Nb)
    d = jnp.sqrt(d2)
    units = units_ref[...]                              # (1, Nb)

    # radial(units * d): quadratic cutoff placeholder, then * exp(-d^2/2)
    u = units * d
    r = jnp.where(u < rc, (1.0 - u / rc) ** 2, 0.0) * jnp.exp(-0.5 * d2)

    # f[n] = r * d^(2n), built in vregs (no scratch stores)
    rows = []
    pw = r
    for _ in range(nm1):
        rows.append(pw)
        pw = pw * d2
    f = jnp.concatenate(rows, axis=0)                   # (nm1, Nb)
    f_tiled = jnp.concatenate([f] * S, axis=0)          # (SNM, Nb)
    fm = mask_ref[...] * f_tiled                        # (SNM, Nb); padded atoms masked

    yt = _ylm_rows(x, y, z, lmax)                       # (LM, Nb), atoms on lanes

    # c[i, lm] += sum_atoms fm[i, atom] * Y[lm, atom]   (MXU, A @ B^T)
    c_acc[...] += lax.dot_general(fm, yt, (((1,), (1,)), ((), ())),
                                  preferred_element_type=jnp.float32)

    @pl.when(k == pl.num_programs(0) - 1)
    def _finalize():
        c = c_acc[...]                                  # (SNM, LM)
        m_t = mt_ref[...]                               # (L1, LM), m_t[l, lm] = M[lm, l]
        # D[j*L1 + l, lm] = c[j, lm] * M[lm, l]  -- static concat, no reshapes
        d_blocks = [c[j:j + 1, :] * m_t for j in range(S * nm1)]
        D = jnp.concatenate(d_blocks, axis=0)           # (SNM*L1, LM)
        # p[i, j*L1 + l] = sum_lm c[i,lm] c[j,lm] M[lm,l]   (one MXU dot, lane-dense out)
        p = lax.dot_general(c, D, (((1,), (1,)), ((), ())),
                            preferred_element_type=jnp.float32)  # (SNM, SNM*L1)
        p = p * nnl_ref[...]
        if normalize:
            nrm = jnp.sqrt(jnp.sum(p * p, keepdims=True)) + eps
            p = p / nrm
        out_ref[...] = p                                # single lane-dense store


def _round_up(x, m):
    return ((x + m - 1) // m) * m


def sub_sesoap_forward(coo, numbers, *, lmax, nmax, species, radii, rc=2.5,
                       normalize=True, flatten=True, atom_block=4096):
    coo = jnp.asarray(coo, jnp.float32)
    N = coo.shape[0]
    S, nm1, L1 = len(species), nmax + 1, lmax + 1
    LM, SNM = L1 * L1, S * nm1

    numbers_np = np.asarray(numbers)
    units_np = np.array([radii[int(zz)] for zz in numbers_np], np.float32)
    units = jnp.asarray(units_np)
    xyz = coo / units[:, None]                           # (N, 3)

    # Atom tile: lane-aligned, no larger than needed. Per-tile VMEM is
    # ~(3 + 1 + SNM) * 4 B * Nb * 2 buffers, so 4K atoms/tile stays far below
    # v7x's 64 MiB VMEM while amortizing per-step overhead on all generations.
    NB = max(128, min(_round_up(int(atom_block), 128), _round_up(N, 128)))
    N_pad = _round_up(N, NB)
    pad = N_pad - N

    xyz_t = jnp.pad(xyz.T, ((0, 0), (0, pad)))           # (3, N_pad)
    units_row = jnp.pad(units[None, :], ((0, 0), (0, pad)))
    mask_np = np.stack([(numbers_np == zz) for zz in species]).astype(np.float32)
    mask_exp = np.pad(np.repeat(mask_np, nm1, axis=0), ((0, 0), (0, pad)))
    mask_exp = jnp.asarray(mask_exp)                     # (SNM, N_pad), padded atoms = 0

    # M[(l,m), k] = Yr[l,m]*d(l==k) + Yi[l,m]*d(m==k); pass transposed (L1, LM)
    one = np.ones((L1, L1), np.float32)
    Yr = 2.0 * np.tril(one) - np.eye(L1, dtype=np.float32)
    Yi = 2.0 * np.triu(one, 1)
    eyeL = np.eye(L1, dtype=np.float32)
    l_idx = np.repeat(np.arange(L1), L1)
    m_idx = np.tile(np.arange(L1), L1)
    m_mat = (Yr.reshape(-1)[:, None] * eyeL[l_idx]
             + Yi.reshape(-1)[:, None] * eyeL[m_idx]).astype(np.float32)   # (LM, L1)
    m_t = jnp.asarray(np.ascontiguousarray(m_mat.T))                        # (L1, LM)

    a = np.array([[1.0 / ((2 * l + 1) * 2 ** (2 * n + l) * fac(n) * fac(n + l))
                   for l in range(L1)] for n in range(nm1)])
    nnl = np.sqrt(a[None] * a[:, None])                                     # (nm1, nm1, L1)
    nnl_flat = jnp.asarray(np.tile(nnl, (S, S, 1)).reshape(SNM, SNM * L1),
                           jnp.float32)                                     # (SNM, SNM*L1)

    kernel = functools.partial(
        _sesoap_kernel, S=S, nm1=nm1, lmax=lmax, rc=float(rc),
        normalize=bool(normalize), eps=float(np.finfo(np.float32).eps))

    grid = (N_pad // NB,)
    p_flat = pl.pallas_call(
        kernel,
        out_shape=jax.ShapeDtypeStruct((SNM, SNM * L1), jnp.float32),
        grid=grid,
        in_specs=[
            pl.BlockSpec((3, NB), lambda k: (0, k)),
            pl.BlockSpec((1, NB), lambda k: (0, k)),
            pl.BlockSpec((SNM, NB), lambda k: (0, k)),
            pl.BlockSpec((L1, LM), lambda k: (0, 0)),
            pl.BlockSpec((SNM, SNM * L1), lambda k: (0, 0)),
        ],
        out_specs=pl.BlockSpec((SNM, SNM * L1), lambda k: (0, 0)),
        scratch_shapes=[pltpu.VMEM((SNM, LM), jnp.float32)],
        compiler_params=pltpu.CompilerParams(
            dimension_semantics=("arbitrary",)),
    )(xyz_t, units_row, mask_exp, m_t, nnl_flat)

    # (i=a*nm1+n1, (b*nm1+n2)*L1+l) -> (a, b, n1, n2, l), then flatten
    p = p_flat.reshape(S, nm1, S, nm1, L1).transpose(0, 2, 1, 3, 4)
    if flatten:
        p = p.reshape(-1)
    return p


# -----------------------------------------------------------------------------
# Pure numpy reference mirroring the torch forward (grad=False, flatten=True).
# -----------------------------------------------------------------------------
def reference_forward(coo, numbers, *, lmax, nmax, species, radii, rc, normalize):
    coo = np.asarray(coo, np.float64)
    numbers = np.asarray(numbers)
    L1, nm1 = lmax + 1, nmax + 1
    units = np.array([radii[int(zz)] for zz in numbers], np.float64)
    xyz = coo / units[:, None]
    d = np.sqrt((xyz ** 2).sum(-1))
    nvec = 2.0 * np.arange(nm1)
    x = units * d
    r = np.where(x < rc, (1.0 - x / rc) ** 2, 0.0) * np.exp(-0.5 * d ** 2)
    f = r[None] * d[None] ** nvec[:, None]                      # (nm1, N)
    Y = np.asarray(ylm_solid(jnp.asarray(xyz, jnp.float32), lmax), np.float64)
    ff = f[:, None, None] * Y[None]                             # (nm1, L1, L1, N)
    c = np.stack([ff[..., numbers == zz].sum(-1) for zz in species])
    nnp = c[None, :, None] * c[:, None, :, None]
    one = np.ones((L1, L1))
    Yr = 2 * np.tril(one) - np.eye(L1)
    Yi = 2 * np.triu(one, 1)
    p = (nnp * Yr).sum(-1) + (nnp * Yi).sum(-2)
    a = np.array([[1.0 / ((2 * l + 1) * 2 ** (2 * n + l) * fac(n) * fac(n + l))
                   for l in range(L1)] for n in range(nm1)])
    p = p * np.sqrt(a[None] * a[:, None])
    if normalize:
        p = p / (np.linalg.norm(p) + np.finfo(np.float32).eps)
    return p.reshape(-1)


if __name__ == "__main__":
    key = jax.random.PRNGKey(0)
    N, lmax, nmax = 16, 3, 2
    rc = 2.5
    radii = {1: 0.7, 8: 1.1}
    numbers = jnp.asarray(np.array([1, 8] * (N // 2), np.int32))
    species = sorted(set(int(zz) for zz in np.asarray(numbers)))
    coo = jax.random.normal(key, (N, 3), jnp.float32)

    p = sub_sesoap_forward(coo, numbers, lmax=lmax, nmax=nmax,
                           species=species, radii=radii, rc=rc, normalize=True)
    p = jax.block_until_ready(p)
    assert p.shape == (len(species) ** 2 * (nmax + 1) ** 2 * (lmax + 1),)

    ref = reference_forward(coo, numbers, lmax=lmax, nmax=nmax,
                            species=species, radii=radii, rc=rc, normalize=True)
    np.testing.assert_allclose(np.asarray(p, np.float64), ref, rtol=2e-2, atol=2e-4)
    print("KERNEL_OK")
</pallas_src>

<mosaic_0001>
module attributes {stable_mosaic.version = 11 : i64} {
  func.func @_sesoap_kernel(%arg0: i32, %arg1: memref<3x128xf32, #tpu.memory_space<vmem>>, %arg2: memref<1x128xf32, #tpu.memory_space<vmem>>, %arg3: memref<6x128xf32, #tpu.memory_space<vmem>>, %arg4: memref<4x16xf32, #tpu.memory_space<vmem>>, %arg5: memref<6x24xf32, #tpu.memory_space<vmem>>, %arg6: memref<6x24xf32, #tpu.memory_space<vmem>>, %arg7: memref<6x16xf32, #tpu.memory_space<vmem>>) attributes {dimension_semantics = [#tpu.dimension_semantics<arbitrary>], iteration_bounds = array<i64: 1>, scalar_prefetch = 0 : i64, scratch_operands = 1 : i64, tpu.core_type = #tpu.core_type<tc>, window_params = [{transform_indices = @transform_0, window_bounds = array<i64: 3, 128>}, {transform_indices = @transform_1, window_bounds = array<i64: 1, 128>}, {transform_indices = @transform_2, window_bounds = array<i64: 6, 128>}, {pipeline_mode = #tpu.pipeline_mode<synchronous>, transform_indices = @transform_3, window_bounds = array<i64: 4, 16>}, {pipeline_mode = #tpu.pipeline_mode<synchronous>, transform_indices = @transform_4, window_bounds = array<i64: 6, 24>}, {pipeline_mode = #tpu.pipeline_mode<synchronous>, transform_indices = @transform_5, window_bounds = array<i64: 6, 24>}]} {
    %c0_i32 = arith.constant 0 : i32
    %0 = arith.cmpi eq, %arg0, %c0_i32 : i32
    %1 = arith.extui %0 : i1 to i32
    %c0_i32_0 = arith.constant 0 : i32
    %2 = arith.cmpi ne, %1, %c0_i32_0 : i32
    scf.if %2 {
      %cst_51 = arith.constant 0.000000e+00 : f32
      %158 = vector.broadcast %cst_51 : f32 to vector<6x16xf32>
      %c0_52 = arith.constant 0 : index
      %c0_53 = arith.constant 0 : index
      %159 = vector.load %arg7[%c0_52, %c0_53] : memref<6x16xf32, #tpu.memory_space<vmem>>, vector<6x16xf32>
      tpu.vector_store %arg7[%c0_52, %c0_53], %158 {strides = array<i32>} : memref<6x16xf32, #tpu.memory_space<vmem>>, vector<6x16xf32>,
    } else {
    }
    %c0 = arith.constant 0 : index
    %c0_1 = arith.constant 0 : index
    %3 = vector.load %arg1[%c0, %c0_1] : memref<3x128xf32, #tpu.memory_space<vmem>>, vector<3x128xf32>
    %4 = vector.extract_strided_slice %3 {offsets = [0, 0], sizes = [1, 128], strides = [1, 1]} : vector<3x128xf32> to vector<1x128xf32>
    %5 = vector.extract_strided_slice %3 {offsets = [1, 0], sizes = [1, 128], strides = [1, 1]} : vector<3x128xf32> to vector<1x128xf32>
    %6 = vector.extract_strided_slice %3 {offsets = [2, 0], sizes = [1, 128], strides = [1, 1]} : vector<3x128xf32> to vector<1x128xf32>
    %7 = arith.mulf %4, %4 : vector<1x128xf32>
    %8 = arith.mulf %5, %5 : vector<1x128xf32>
    %9 = arith.addf %7, %8 : vector<1x128xf32>
    %10 = arith.mulf %6, %6 : vector<1x128xf32>
    %11 = arith.addf %9, %10 : vector<1x128xf32>
    %12 = math.sqrt %11 : vector<1x128xf32>
    %c0_2 = arith.constant 0 : index
    %c0_3 = arith.constant 0 : index
    %13 = vector.load %arg2[%c0_2, %c0_3] : memref<1x128xf32, #tpu.memory_space<vmem>>, vector<1x128xf32>
    %14 = arith.mulf %13, %12 : vector<1x128xf32>
    %cst = arith.constant 2.500000e+00 : f32
    %15 = vector.broadcast %cst : f32 to vector<1x128xf32>
    %16 = arith.cmpf olt, %14, %15 : vector<1x128xf32>
    %cst_4 = arith.constant 2.500000e+00 : f32
    %17 = vector.broadcast %cst_4 : f32 to vector<1x128xf32>
    %18 = arith.divf %14, %17 : vector<1x128xf32>
    %cst_5 = arith.constant 1.000000e+00 : f32
    %19 = vector.broadcast %cst_5 : f32 to vector<1x128xf32>
    %20 = arith.subf %19, %18 : vector<1x128xf32>
    %21 = arith.mulf %20, %20 : vector<1x128xf32>
    %cst_6 = arith.constant 0.000000e+00 : f32
    %22 = vector.broadcast %cst_6 : f32 to vector<1x128xf32>
    %23 = arith.select %16, %21, %22 : vector<1x128xi1>, vector<1x128xf32>
    %cst_7 = arith.constant -5.000000e-01 : f32
    %24 = vector.broadcast %cst_7 : f32 to vector<1x128xf32>
    %25 = arith.mulf %24, %11 : vector<1x128xf32>
    %26 = math.exp %25 : vector<1x128xf32>
    %27 = arith.mulf %23, %26 : vector<1x128xf32>
    %28 = arith.mulf %27, %11 : vector<1x128xf32>
    %29 = arith.mulf %28, %11 : vector<1x128xf32>
    %30 = tpu.concatenate %27, %28, %29 in 0 : vector<1x128xf32>, vector<1x128xf32>, vector<1x128xf32> -> vector<3x128xf32>
    %31 = tpu.concatenate %30, %30 in 0 : vector<3x128xf32>, vector<3x128xf32> -> vector<6x128xf32>
    %c0_8 = arith.constant 0 : index
    %c0_9 = arith.constant 0 : index
    %32 = vector.load %arg3[%c0_8, %c0_9] : memref<6x128xf32, #tpu.memory_space<vmem>>, vector<6x128xf32>
    %33 = arith.mulf %32, %31 : vector<6x128xf32>
    %34 = arith.mulf %4, %4 : vector<1x128xf32>
    %35 = arith.mulf %5, %5 : vector<1x128xf32>
    %36 = arith.addf %34, %35 : vector<1x128xf32>
    %37 = arith.mulf %6, %6 : vector<1x128xf32>
    %38 = arith.addf %36, %37 : vector<1x128xf32>
    %cst_10 = arith.constant 1.000000e+00 : f32
    %39 = vector.broadcast %cst_10 : f32 to vector<1x128xf32>
    %cst_11 = arith.constant 1.000000e+00 : f32
    %40 = vector.broadcast %cst_11 : f32 to vector<1x128xf32>
    %41 = arith.mulf %39, %40 : vector<1x128xf32>
    %cst_12 = arith.constant 3.000000e+00 : f32
    %42 = vector.broadcast %cst_12 : f32 to vector<1x128xf32>
    %43 = arith.mulf %41, %42 : vector<1x128xf32>
    %cst_13 = arith.constant 5.000000e+00 : f32
    %44 = vector.broadcast %cst_13 : f32 to vector<1x128xf32>
    %45 = arith.mulf %43, %44 : vector<1x128xf32>
    %cst_14 = arith.constant 1.000000e+00 : f32
    %46 = vector.broadcast %cst_14 : f32 to vector<1x128xf32>
    %47 = arith.mulf %46, %6 : vector<1x128xf32>
    %48 = arith.mulf %47, %39 : vector<1x128xf32>
    %cst_15 = arith.constant 3.000000e+00 : f32
    %49 = vector.broadcast %cst_15 : f32 to vector<1x128xf32>
    %50 = arith.mulf %49, %6 : vector<1x128xf32>
    %51 = arith.mulf %50, %41 : vector<1x128xf32>
    %cst_16 = arith.constant 5.000000e+00 : f32
    %52 = vector.broadcast %cst_16 : f32 to vector<1x128xf32>
    %53 = arith.mulf %52, %6 : vector<1x128xf32>
    %54 = arith.mulf %53, %43 : vector<1x128xf32>
    %cst_17 = arith.constant 3.000000e+00 : f32
    %55 = vector.broadcast %cst_17 : f32 to vector<1x128xf32>
    %56 = arith.mulf %55, %6 : vector<1x128xf32>
    %57 = arith.mulf %56, %48 : vector<1x128xf32>
    %cst_18 = arith.constant 1.000000e+00 : f32
    %58 = vector.broadcast %cst_18 : f32 to vector<1x128xf32>
    %59 = arith.mulf %58, %38 : vector<1x128xf32>
    %60 = arith.mulf %59, %39 : vector<1x128xf32>
    %61 = arith.subf %57, %60 : vector<1x128xf32>
    %cst_19 = arith.constant 2.000000e+00 : f32
    %62 = vector.broadcast %cst_19 : f32 to vector<1x128xf32>
    %63 = arith.divf %61, %62 : vector<1x128xf32>
    %cst_20 = arith.constant 5.000000e+00 : f32
    %64 = vector.broadcast %cst_20 : f32 to vector<1x128xf32>
    %65 = arith.mulf %64, %6 : vector<1x128xf32>
    %66 = arith.mulf %65, %63 : vector<1x128xf32>
    %cst_21 = arith.constant 2.000000e+00 : f32
    %67 = vector.broadcast %cst_21 : f32 to vector<1x128xf32>
    %68 = arith.mulf %67, %38 : vector<1x128xf32>
    %69 = arith.mulf %68, %48 : vector<1x128xf32>
    %70 = arith.subf %66, %69 : vector<1x128xf32>
    %cst_22 = arith.constant 3.000000e+00 : f32
    %71 = vector.broadcast %cst_22 : f32 to vector<1x128xf32>
    %72 = arith.divf %70, %71 : vector<1x128xf32>
    %cst_23 = arith.constant 5.000000e+00 : f32
    %73 = vector.broadcast %cst_23 : f32 to vector<1x128xf32>
    %74 = arith.mulf %73, %6 : vector<1x128xf32>
    %75 = arith.mulf %74, %51 : vector<1x128xf32>
    %cst_24 = arith.constant 3.000000e+00 : f32
    %76 = vector.broadcast %cst_24 : f32 to vector<1x128xf32>
    %77 = arith.mulf %76, %38 : vector<1x128xf32>
    %78 = arith.mulf %77, %41 : vector<1x128xf32>
    %79 = arith.subf %75, %78 : vector<1x128xf32>
    %cst_25 = arith.constant 2.000000e+00 : f32
    %80 = vector.broadcast %cst_25 : f32 to vector<1x128xf32>
    %81 = arith.divf %79, %80 : vector<1x128xf32>
    %cst_26 = arith.constant 1.000000e+00 : f32
    %82 = vector.broadcast %cst_26 : f32 to vector<1x128xf32>
    %cst_27 = arith.constant 0.000000e+00 : f32
    %83 = vector.broadcast %cst_27 : f32 to vector<1x128xf32>
    %84 = arith.mulf %82, %4 : vector<1x128xf32>
    %85 = arith.mulf %83, %5 : vector<1x128xf32>
    %86 = arith.subf %84, %85 : vector<1x128xf32>
    %87 = arith.mulf %83, %4 : vector<1x128xf32>
    %88 = arith.mulf %82, %5 : vector<1x128xf32>
    %89 = arith.addf %87, %88 : vector<1x128xf32>
    %90 = arith.mulf %86, %4 : vector<1x128xf32>
    %91 = arith.mulf %89, %5 : vector<1x128xf32>
    %92 = arith.subf %90, %91 : vector<1x128xf32>
    %93 = arith.mulf %89, %4 : vector<1x128xf32>
    %94 = arith.mulf %86, %5 : vector<1x128xf32>
    %95 = arith.addf %93, %94 : vector<1x128xf32>
    %96 = arith.mulf %92, %4 : vector<1x128xf32>
    %97 = arith.mulf %95, %5 : vector<1x128xf32>
    %98 = arith.subf %96, %97 : vector<1x128xf32>
    %99 = arith.mulf %95, %4 : vector<1x128xf32>
    %100 = arith.mulf %92, %5 : vector<1x128xf32>
    %101 = arith.addf %99, %100 : vector<1x128xf32>
    %cst_28 = arith.constant 0.282094806 : f32
    %102 = vector.broadcast %cst_28 : f32 to vector<1x128xf32>
    %103 = arith.mulf %102, %39 : vector<1x128xf32>
    %104 = arith.mulf %103, %82 : vector<1x128xf32>
    %cst_29 = arith.constant 0.488602519 : f32
    %105 = vector.broadcast %cst_29 : f32 to vector<1x128xf32>
    %106 = arith.mulf %105, %48 : vector<1x128xf32>
    %107 = arith.mulf %106, %82 : vector<1x128xf32>
    %cst_30 = arith.constant 0.345494151 : f32
    %108 = vector.broadcast %cst_30 : f32 to vector<1x128xf32>
    %109 = arith.mulf %108, %41 : vector<1x128xf32>
    %110 = arith.mulf %109, %86 : vector<1x128xf32>
    %cst_31 = arith.constant 0.345494151 : f32
    %111 = vector.broadcast %cst_31 : f32 to vector<1x128xf32>
    %112 = arith.mulf %111, %41 : vector<1x128xf32>
    %113 = arith.mulf %112, %89 : vector<1x128xf32>
    %cst_32 = arith.constant 0.63078314 : f32
    %114 = vector.broadcast %cst_32 : f32 to vector<1x128xf32>
    %115 = arith.mulf %114, %63 : vector<1x128xf32>
    %116 = arith.mulf %115, %82 : vector<1x128xf32>
    %cst_33 = arith.constant 0.257516146 : f32
    %117 = vector.broadcast %cst_33 : f32 to vector<1x128xf32>
    %118 = arith.mulf %117, %51 : vector<1x128xf32>
    %119 = arith.mulf %118, %86 : vector<1x128xf32>
    %cst_34 = arith.constant 0.257516146 : f32
    %120 = vector.broadcast %cst_34 : f32 to vector<1x128xf32>
    %121 = arith.mulf %120, %51 : vector<1x128xf32>
    %122 = arith.mulf %121, %89 : vector<1x128xf32>
    %cst_35 = arith.constant 0.128758073 : f32
    %123 = vector.broadcast %cst_35 : f32 to vector<1x128xf32>
    %124 = arith.mulf %123, %43 : vector<1x128xf32>
    %125 = arith.mulf %124, %92 : vector<1x128xf32>
    %cst_36 = arith.constant 0.128758073 : f32
    %126 = vector.broadcast %cst_36 : f32 to vector<1x128xf32>
    %127 = arith.mulf %126, %43 : vector<1x128xf32>
    %128 = arith.mulf %127, %95 : vector<1x128xf32>
    %cst_37 = arith.constant 0.746352672 : f32
    %129 = vector.broadcast %cst_37 : f32 to vector<1x128xf32>
    %130 = arith.mulf %129, %72 : vector<1x128xf32>
    %131 = arith.mulf %130, %82 : vector<1x128xf32>
    %cst_38 = arith.constant 0.215453461 : f32
    %132 = vector.broadcast %cst_38 : f32 to vector<1x128xf32>
    %133 = arith.mulf %132, %81 : vector<1x128xf32>
    %134 = arith.mulf %133, %86 : vector<1x128xf32>
    %cst_39 = arith.constant 0.215453461 : f32
    %135 = vector.broadcast %cst_39 : f32 to vector<1x128xf32>
    %136 = arith.mulf %135, %81 : vector<1x128xf32>
    %137 = arith.mulf %136, %89 : vector<1x128xf32>
    %cst_40 = arith.constant 0.0681323633 : f32
    %138 = vector.broadcast %cst_40 : f32 to vector<1x128xf32>
    %139 = arith.mulf %138, %54 : vector<1x128xf32>
    %140 = arith.mulf %139, %92 : vector<1x128xf32>
    %cst_41 = arith.constant 0.0681323633 : f32
    %141 = vector.broadcast %cst_41 : f32 to vector<1x128xf32>
    %142 = arith.mulf %141, %54 : vector<1x128xf32>
    %143 = arith.mulf %142, %95 : vector<1x128xf32>
    %cst_42 = arith.constant 0.027814921 : f32
    %144 = vector.broadcast %cst_42 : f32 to vector<1x128xf32>
    %145 = arith.mulf %144, %45 : vector<1x128xf32>
    %146 = arith.mulf %145, %98 : vector<1x128xf32>
    %cst_43 = arith.constant 0.027814921 : f32
    %147 = vector.broadcast %cst_43 : f32 to vector<1x128xf32>
    %148 = arith.mulf %147, %45 : vector<1x128xf32>
    %149 = arith.mulf %148, %101 : vector<1x128xf32>
    %150 = tpu.concatenate %104, %113, %128, %149, %110, %107, %122, %143, %125, %119, %116, %137, %146, %140, %134, %131 in 0 : vector<1x128xf32>, vector<1x128xf32>, vector<1x128xf32>, vector<1x128xf32>, vector<1x128xf32>, vector<1x128xf32>, vector<1x128xf32>, vector<1x128xf32>, vector<1x128xf32>, vector<1x128xf32>, vector<1x128xf32>, vector<1x128xf32>, vector<1x128xf32>, vector<1x128xf32>, vector<1x128xf32>, vector<1x128xf32> -> vector<16x128xf32>
    %c0_44 = arith.constant 0 : index
    %c0_45 = arith.constant 0 : index
    %151 = vector.load %arg7[%c0_44, %c0_45] : memref<6x16xf32, #tpu.memory_space<vmem>>, vector<6x16xf32>
    %cst_46 = arith.constant dense<0.000000e+00> : vector<6x16xf32>
    %152 = tpu.matmul %33, %150, %cst_46 {dimension_numbers = #tpu.dot_dimension_numbers<[1], [1], [0], [0], [0, 0, 1, 0], [], []>} : vector<6x128xf32>, vector<16x128xf32>, vector<6x16xf32> -> vector<6x16xf32>
    %153 = arith.addf %151, %152 : vector<6x16xf32>
    %c0_47 = arith.constant 0 : index
    %c0_48 = arith.constant 0 : index
    %154 = vector.load %arg7[%c0_47, %c0_48] : memref<6x16xf32, #tpu.memory_space<vmem>>, vector<6x16xf32>
    tpu.vector_store %arg7[%c0_47, %c0_48], %153 {strides = array<i32>} : memref<6x16xf32, #tpu.memory_space<vmem>>, vector<6x16xf32>,
    %c0_i32_49 = arith.constant 0 : i32
    %155 = arith.cmpi eq, %arg0, %c0_i32_49 : i32
    %156 = arith.extui %155 : i1 to i32
    %c0_i32_50 = arith.constant 0 : i32
    %157 = arith.cmpi ne, %156, %c0_i32_50 : i32
    scf.if %157 {
      %c0_51 = arith.constant 0 : index
      %c0_52 = arith.constant 0 : index
      %158 = vector.load %arg7[%c0_51, %c0_52] : memref<6x16xf32, #tpu.memory_space<vmem>>, vector<6x16xf32>
      %c0_53 = arith.constant 0 : index
      %c0_54 = arith.constant 0 : index
      %159 = vector.load %arg4[%c0_53, %c0_54] : memref<4x16xf32, #tpu.memory_space<vmem>>, vector<4x16xf32>
      %160 = vector.extract_strided_slice %158 {offsets = [0, 0], sizes = [1, 16], strides = [1, 1]} : vector<6x16xf32> to vector<1x16xf32>
      %161 = vector.broadcast %160 : vector<1x16xf32> to vector<4x16xf32>
      %162 = arith.mulf %161, %159 : vector<4x16xf32>
      %163 = vector.extract_strided_slice %158 {offsets = [1, 0], sizes = [1, 16], strides = [1, 1]} : vector<6x16xf32> to vector<1x16xf32>
      %164 = vector.broadcast %163 : vector<1x16xf32> to vector<4x16xf32>
      %165 = arith.mulf %164, %159 : vector<4x16xf32>
      %166 = vector.extract_strided_slice %158 {offsets = [2, 0], sizes = [1, 16], strides = [1, 1]} : vector<6x16xf32> to vector<1x16xf32>
      %167 = vector.broadcast %166 : vector<1x16xf32> to vector<4x16xf32>
      %168 = arith.mulf %167, %159 : vector<4x16xf32>
      %169 = vector.extract_strided_slice %158 {offsets = [3, 0], sizes = [1, 16], strides = [1, 1]} : vector<6x16xf32> to vector<1x16xf32>
      %170 = vector.broadcast %169 : vector<1x16xf32> to vector<4x16xf32>
      %171 = arith.mulf %170, %159 : vector<4x16xf32>
      %172 = vector.extract_strided_slice %158 {offsets = [4, 0], sizes = [1, 16], strides = [1, 1]} : vector<6x16xf32> to vector<1x16xf32>
      %173 = vector.broadcast %172 : vector<1x16xf32> to vector<4x16xf32>
      %174 = arith.mulf %173, %159 : vector<4x16xf32>
      %175 = vector.extract_strided_slice %158 {offsets = [5, 0], sizes = [1, 16], strides = [1, 1]} : vector<6x16xf32> to vector<1x16xf32>
      %176 = vector.broadcast %175 : vector<1x16xf32> to vector<4x16xf32>
      %177 = arith.mulf %176, %159 : vector<4x16xf32>
      %178 = tpu.concatenate %162, %165, %168, %171, %174, %177 in 0 : vector<4x16xf32>, vector<4x16xf32>, vector<4x16xf32>, vector<4x16xf32>, vector<4x16xf32>, vector<4x16xf32> -> vector<24x16xf32>
      %cst_55 = arith.constant dense<0.000000e+00> : vector<6x24xf32>
      %179 = tpu.matmul %158, %178, %cst_55 {dimension_numbers = #tpu.dot_dimension_numbers<[1], [1], [0], [0], [0, 0, 1, 0], [], []>} : vector<6x16xf32>, vector<24x16xf32>, vector<6x24xf32> -> vector<6x24xf32>
      %c0_56 = arith.constant 0 : index
      %c0_57 = arith.constant 0 : index
      %180 = vector.load %arg5[%c0_56, %c0_57] : memref<6x24xf32, #tpu.memory_space<vmem>>, vector<6x24xf32>
      %181 = arith.mulf %179, %180 : vector<6x24xf32>
      %182 = arith.mulf %181, %181 : vector<6x24xf32>
      %183 = vector.shape_cast %182 : vector<6x24xf32> to vector<1x6x24xf32>
      %cst_58 = arith.constant dense<0.000000e+00> : vector<1xf32>
      %184 = vector.multi_reduction <add>, %183, %cst_58 [1, 2] : vector<1x6x24xf32> to vector<1xf32>
      %185 = vector.shape_cast %184 : vector<1xf32> to vector<1x1x1xf32>
      %186 = vector.extract %185[0, 0, 0] : f32 from vector<1x1x1xf32>
      %187 = vector.broadcast %186 : f32 to vector<1x1xf32>
      %188 = math.sqrt %187 : vector<1x1xf32>
      %cst_59 = arith.constant 1.1920929E-7 : f32
      %189 = vector.broadcast %cst_59 : f32 to vector<1x1xf32>
      %190 = arith.addf %188, %189 : vector<1x1xf32>
      %191 = vector.broadcast %190 : vector<1x1xf32> to vector<6x24xf32>
      %192 = arith.divf %181, %191 : vector<6x24xf32>
      %c0_60 = arith.constant 0 : index
      %c0_61 = arith.constant 0 : index
      %193 = vector.load %arg6[%c0_60, %c0_61] : memref<6x24xf32, #tpu.memory_space<vmem>>, vector<6x24xf32>
      tpu.vector_store %arg6[%c0_60, %c0_61], %192 {strides = array<i32>} : memref<6x24xf32, #tpu.memory_space<vmem>>, vector<6x24xf32>,
    } else {
    }
    return
  }
  func.func @transform_0(%arg0: i32) -> (i32, i32) {
    %c0_i32 = arith.constant 0 : i32
    %c0_i32_0 = arith.constant 0 : i32
    return %c0_i32, %arg0 : i32, i32
  }
  func.func @transform_1(%arg0: i32) -> (i32, i32) {
    %c0_i32 = arith.constant 0 : i32
    %c0_i32_0 = arith.constant 0 : i32
    return %c0_i32, %arg0 : i32, i32
  }
  func.func @transform_2(%arg0: i32) -> (i32, i32) {
    %c0_i32 = arith.constant 0 : i32
    %c0_i32_0 = arith.constant 0 : i32
    return %c0_i32, %arg0 : i32, i32
  }
  func.func @transform_3(%arg0: i32) -> (i32, i32) {
    %c0_i32 = arith.constant 0 : i32
    %c0_i32_0 = arith.constant 0 : i32
    %c0_i32_1 = arith.constant 0 : i32
    return %c0_i32, %c0_i32_0 : i32, i32
  }
  func.func @transform_4(%arg0: i32) -> (i32, i32) {
    %c0_i32 = arith.constant 0 : i32
    %c0_i32_0 = arith.constant 0 : i32
    %c0_i32_1 = arith.constant 0 : i32
    return %c0_i32, %c0_i32_0 : i32, i32
  }
  func.func @transform_5(%arg0: i32) -> (i32, i32) {
    %c0_i32 = arith.constant 0 : i32
    %c0_i32_0 = arith.constant 0 : i32
    %c0_i32_1 = arith.constant 0 : i32
    return %c0_i32, %c0_i32_0 : i32, i32
  }
}

</mosaic_0001>

<llo_original>
// kernel: tpu_custom_call.1
$region0: #{tpu_custom_call.1}
  #allocation0 [shape = 'u32[]', space=smem, size = 0x4, offset = 0x4, fixed_abs, tag = 'smem constant byte address 0x4 - core index']
  #allocation1 [shape = 'u32[144,128]{1,0:T(1,128)}', space=vmem, size = 0x12000, scoped, tag = 'internal scratch']
  #allocation2 [shape = 'f32[6,16]{1,0:T(8,128)}', space=vmem, size = 0x1000, scoped, tag = 'scratch operand']
  %s0 = inlined_call_operand.hbm [shape: f32[3,128], index: 0, kind: input, shape index: {}]
  %s1 = inlined_call_operand.vmem [shape: f32[1,128], index: 1, kind: input, shape index: {}]
  %s2 = inlined_call_operand.hbm [shape: f32[6,128], index: 2, kind: input, shape index: {}]
  %s3 = inlined_call_operand.vmem [shape: f32[4,16], index: 3, kind: input, shape index: {}]
  %s4 = inlined_call_operand.vmem [shape: f32[6,24], index: 4, kind: input, shape index: {}]
  %s5 = inlined_call_operand.hbm [shape: f32[6,24], index: 5, kind: output, shape index: {}]
  %s6 = sld [smem:[#allocation0]]
  $region46: #{tpu_custom_call.1} parent=0
    _
  %s8 = ssub.s32 1, %s6
  %s9 = scalar_select 0, %s8, %s6
  $region1: #{tpu_custom_call.1} parent=0
    #allocation3 [shape = 'u8[2048]{0}', space=vmem, size = 0x800, scoped, tag = 'input window, operand 0, single buffered']
    #allocation4 [shape = 's32[1]{0}', space=sflag, size = 0x4, scoped, tag = 'scoped memory for tpu_custom_call.1']
    #allocation5 [shape = 's32[1]{0}', space=sflag, size = 0x4, scoped, tag = 'scoped memory for tpu_custom_call.1']
    #allocation6 [shape = 'u8[4096]{0}', space=vmem, size = 0x1000, scoped, tag = 'input window, operand 2, single buffered']
    #allocation7 [shape = 's32[1]{0}', space=sflag, size = 0x4, scoped, tag = 'scoped memory for tpu_custom_call.1']
    #allocation8 [shape = 'u8[4096]{0}', space=vmem, size = 0x1000, scoped, tag = 'output window, operand 0, single buffered']
    %10 = vsyncpa [#allocation4], 0
    %11 = vsyncpa [#allocation7], 0
    %12 = vsyncpa [#allocation5], 0
    // Predicated region
    $region2: #{tpu_custom_call.1} parent=1 // pred_check
      _
    $region3: #{tpu_custom_call.1} parent=1 // pred_check_branch
      %14 = sbr.rel (0) target = $region5
    $region4: #{tpu_custom_call.1} parent=1 // pred_region
      %s16 = ssub.s32 64, 64
      %17 = vsyncadd [#allocation4], %s16
      %s19 = sshll.u32 [#allocation3], 4
      %s20 = int_to_ptr.vmem [resolvable:$true] %s19
      %22 = dma.hbm_to_vmem [thread:$0]  %s0, 64, %s20, [#allocation4]
    $region5: #{tpu_custom_call.1} parent=1 // pred_fallthru
      _
    // Predicated region
    $region6: #{tpu_custom_call.1} parent=1 // pred_check
      _
    $region7: #{tpu_custom_call.1} parent=1 // pred_check_branch
      %24 = sbr.rel (0) target = $region9
    $region8: #{tpu_custom_call.1} parent=1 // pred_region
      _
    $region9: #{tpu_custom_call.1} parent=1 // pred_fallthru
      _
    // Predicated region
    $region10: #{tpu_custom_call.1} parent=1 // pred_check
      _
    $region11: #{tpu_custom_call.1} parent=1 // pred_check_branch
      %26 = sbr.rel (0) target = $region13
    $region12: #{tpu_custom_call.1} parent=1 // pred_region
      %s28 = ssub.s32 128, 128
      %29 = vsyncadd [#allocation7], %s28
      %s31 = sshll.u32 [#allocation6], 4
      %s32 = int_to_ptr.vmem [resolvable:$true] %s31
      %34 = dma.hbm_to_vmem [thread:$0]  %s2, 128, %s32, [#allocation7]
    $region13: #{tpu_custom_call.1} parent=1 // pred_fallthru
      _
    // Predicated region
    $region14: #{tpu_custom_call.1} parent=1 // pred_check
      _
    $region15: #{tpu_custom_call.1} parent=1 // pred_check_branch
      %36 = sbr.rel (0) target = $region17
    $region16: #{tpu_custom_call.1} parent=1 // pred_region
      _
    $region17: #{tpu_custom_call.1} parent=1 // pred_fallthru
      _
    // Predicated region
    $region18: #{tpu_custom_call.1} parent=1 // pred_check
      _
    $region19: #{tpu_custom_call.1} parent=1 // pred_check_branch
      %38 = sbr.rel (0) target = $region21
    $region20: #{tpu_custom_call.1} parent=1 // pred_region
      _
    $region21: #{tpu_custom_call.1} parent=1 // pred_fallthru
      _
    // Predicated region
    $region22: #{tpu_custom_call.1} parent=1 // pred_check
      _
    $region23: #{tpu_custom_call.1} parent=1 // pred_check_branch
      %40 = sbr.rel (0) target = $region25
    $region24: #{tpu_custom_call.1} parent=1 // pred_region
      %41 = dma.done [#allocation4], 64
    $region25: #{tpu_custom_call.1} parent=1 // pred_fallthru
      _
    // Predicated region
    $region26: #{tpu_custom_call.1} parent=1 // pred_check
      _
    $region27: #{tpu_custom_call.1} parent=1 // pred_check_branch
      %43 = sbr.rel (0) target = $region29
    $region28: #{tpu_custom_call.1} parent=1 // pred_region
      %44 = dma.done [#allocation7], 128
    $region29: #{tpu_custom_call.1} parent=1 // pred_fallthru
      _
    %p45 = scmp.eq.s32.totalorder 0, 0
    // Predicated region
    $region30: #{tpu_custom_call.1} parent=1 // pred_check
      %p46 = pneg %p45
    $region31: #{tpu_custom_call.1} parent=1 // pred_check_branch
      %48 = sbr.rel (%p46) target = $region33
    $region32: #{tpu_custom_call.1} parent=1 // pred_region
      %vm49 = vcmask 128000
      %50 = vst.msk [vmem:[#allocation2] sm:$0x3f] %vm49, 0.0
    $region33: #{tpu_custom_call.1} parent=1 // pred_fallthru
      _
    %v51 = vld [vmem:[#allocation3] sm:$0x7]
    %v52 = vmul.f32 %v51, %v51
    %v54 = vrot.slane %v52, 1
    %v56 = vadd.f32 %v52, %v54
    %v57 = vrot.slane %v52, 2
    %v59 = vadd.f32 %v56, %v57
    %v60 = vrsqrt.pop %v59
    %v61 = vmul.f32 %v59, %v60
    %vm62 = vcmp.eq.f32.partialorder %v59, inf
    %v63 = vsel %vm62, %v59, %v61
    %vm64 = vcmp.eq.f32.partialorder %v59, 0.0
    %v65 = vand.u32 %v59, 2147483648
    %v66 = vsel %vm64, %v65, %v63
    %v67 = vld [vmem:[%s1] sm:$0x1]
    %v68 = vmul.f32 %v67, %v66
    %vm69 = vcmp.lt.f32.partialorder %v68, 2.5
    %v70 = vrcp.pop 2.5
    %v71 = vmul.f32 %v68, %v70
    %v72 = vsub.f32 1.0, %v71
    %v73 = vmul.f32 %v72, %v72
    %v74 = vsel %vm69, %v73, 0.0
    %v75 = vmul.f32 %v59, -0.5
    %v76 = vmul.f32 %v75, 1.442695
    %v77 = vpow.pop %v76
    %v78 = vmul.f32 %v74, %v77
    %v79 = vmul.f32 %v78, %v59
    %v80 = vmul.f32 %v79, %v59
    %v82 = vlaneseq
    %v83 = vshrl.u32 %v82, 7
    %v84 = vsub.s32 0, %v83
    %v85 = vrot.slane %v79, %v84
    %v88 = vlaneseq
    %v89 = vshrl.u32 %v88, 7
    %v90 = vsub.s32 0, %v89
    %v91 = vrot.slane %v80, %v90
    %vm93 = vcmask 1040384
    %v94 = vsel %vm93, %v78, %v85
    %vm95 = vcmask 1041408
    %v96 = vsel %vm95, %v94, %v91
    %v98 = vrot.slane %v96, 5
    %vm100 = vcmask 1042432
    %v101 = vsel %vm100, %v96, %v98
    %v102 = vld [vmem:[#allocation6] sm:$0x3f]
    %v103 = vmul.f32 %v102, %v101
    %v104 = vmul.f32 %v51, 3.0
    %v105 = vmul.f32 %v51, 5.0
    %v106 = vmul.f32 %v105, 3.0
    %v107 = vmul.f32 %v104, %v51
    %v109 = vrot.slane %v59, 6
    %v111 = vsub.f32 %v107, %v109
    %v112 = vrcp.pop 2.0
    %v113 = vmul.f32 %v111, %v112
    %v114 = vmul.f32 %v105, %v113
    %v115 = vmul.f32 %v59, 2.0
    %v117 = vrot.slane %v51, 2
    %v119 = vmul.f32 %v115, %v117
    %v121 = vrot.slane %v119, 6
    %v123 = vsub.f32 %v114, %v121
    %v124 = vrcp.pop 3.0
    %v125 = vmul.f32 %v123, %v124
    %v126 = vmul.f32 %v105, %v104
    %v127 = vmul.f32 %v59, 3.0
    %v129 = vrot.slane %v127, 6
    %v131 = vsub.f32 %v126, %v129
    %v132 = vmul.f32 %v131, %v112
    %v133 = vmul.f32 %v51, 0.0
    %v135 = vrot.slane %v133, 1
    %v137 = vsub.f32 %v51, %v135
    %v138 = vrot.slane %v51, 1
    %v140 = vadd.f32 %v133, %v138
    %v141 = vmul.f32 %v137, %v51
    %v142 = vmul.f32 %v140, %v138
    %v143 = vsub.f32 %v141, %v142
    %v144 = vmul.f32 %v140, %v51
    %v145 = vmul.f32 %v137, %v138
    %v146 = vadd.f32 %v144, %v145
    %v147 = vmul.f32 %v143, %v51
    %v148 = vmul.f32 %v146, %v138
    %v149 = vsub.f32 %v147, %v148
    %v150 = vmul.f32 %v146, %v51
    %v151 = vmul.f32 %v143, %v138
    %v152 = vadd.f32 %v150, %v151
    %v153 = vmul.f32 %v51, 0.48860252
    %v154 = vmul.f32 %v137, 0.34549415
    %v155 = vmul.f32 %v140, 0.34549415
    %v156 = vmul.f32 %v113, 0.63078314
    %v157 = vmul.f32 %v104, 0.25751615
    %v159 = vrot.slane %v137, 6
    %v161 = vmul.f32 %v157, %v159
    %v163 = vrot.slane %v140, 6
    %v165 = vmul.f32 %v157, %v163
    %v166 = vmul.f32 %v143, 0.38627422
    %v167 = vmul.f32 %v146, 0.38627422
    %v168 = vmul.f32 %v125, 0.7463527
    %v169 = vmul.f32 %v132, 0.21545346
    %v170 = vmul.f32 %v169, %v159
    %v171 = vmul.f32 %v169, %v163
    %v172 = vmul.f32 %v106, 0.06813236
    %v174 = vrot.slane %v143, 6
    %v176 = vmul.f32 %v172, %v174
    %v178 = vrot.slane %v146, 6
    %v180 = vmul.f32 %v172, %v178
    %v181 = vmul.f32 %v149, 0.4172238
    %v182 = vmul.f32 %v152, 0.4172238
    %v184 = vrot.slane %v155, 7
    %v187 = vrot.slane %v167, 6
    %v190 = vrot.slane %v182, 5
    %v193 = vrot.slane %v154, 4
    %v196 = vrot.slane %v153, 5
    %v199 = vrot.slane %v165, 4
    %v202 = vrot.slane %v180, 3
    %v205 = vrot.slane %v161, 1
    %v208 = vrot.slane %v171, 7
    %v211 = vrot.slane %v181, 4
    %v214 = vrot.slane %v176, 5
    %v217 = vrot.slane %v170, 4
    %v220 = vrot.slane %v168, 3
    %v222 = vsel %vm93, 0.2820948, %v184
    %v223 = vsel %vm95, %v222, %v187
    %v224 = vsel %vm100, %v223, %v190
    %vm225 = vcmask 1043456
    %v226 = vsel %vm225, %v224, %v193
    %vm227 = vcmask 1044480
    %v228 = vsel %vm227, %v226, %v196
    %vm229 = vcmask 1045504
    %v230 = vsel %vm229, %v228, %v199
    %vm231 = vcmask 1046528
    %v232 = vsel %vm231, %v230, %v202
    %v233 = vsel %vm93, %v166, %v205
    %v234 = vsel %vm95, %v233, %v156
    %v235 = vsel %vm100, %v234, %v208
    %v236 = vsel %vm225, %v235, %v211
    %v237 = vsel %vm227, %v236, %v214
    %v238 = vsel %vm229, %v237, %v217
    %v239 = vsel %vm231, %v238, %v220
    %v240 = vld [vmem:[#allocation2] sm:$0x3f]
    %241 = vmatprep.subr.mxu0 0.0
    %242 = vmatpush1.xpose.msra.mxu0 %v232
    %243 = vmatprep.subr.mxu0 0.0
    %244 = vmatpush1.xpose.msra.mxu0 %v239
    %245 = vmatprep.subr.mxu0 0.0
    %246 = vmatpush1.xpose.msra.mxu0 0.0
    %247 = vmatprep.subr.mxu0 0.0
    %248 = vmatpush1.xpose.msra.mxu0 0.0
    %249 = vmatprep.subr.mxu0 0.0
    %250 = vmatpush1.xpose.msra.mxu0 0.0
    %251 = vmatprep.subr.mxu0 0.0
    %252 = vmatpush1.xpose.msra.mxu0 0.0
    %253 = vmatprep.subr.mxu0 0.0
    %254 = vmatpush1.xpose.msra.mxu0 0.0
    %255 = vmatprep.subr.mxu0 0.0
    %256 = vmatpush1.xpose.msra.mxu0 0.0
    %257 = vmatprep.subr.mxu0 0.0
    %258 = vmatpush1.xpose.msra.mxu0 0.0
    %259 = vmatprep.subr.mxu0 0.0
    %260 = vmatpush1.xpose.msra.mxu0 0.0
    %261 = vmatprep.subr.mxu0 0.0
    %262 = vmatpush1.xpose.msra.mxu0 0.0
    %263 = vmatprep.subr.mxu0 0.0
    %264 = vmatpush1.xpose.msra.mxu0 0.0
    %265 = vmatprep.subr.mxu0 0.0
    %266 = vmatpush1.xpose.msra.mxu0 0.0
    %267 = vmatprep.subr.mxu0 0.0
    %268 = vmatpush1.xpose.msra.mxu0 0.0
    %269 = vmatprep.subr.mxu0 0.0
    %270 = vmatpush1.xpose.msra.mxu0 0.0
    %271 = vmatprep.subr.mxu0 0.0
    %272 = vmatpush1.xpose.msra.mxu0 0.0
    %273 = vmatprep.subr.mxu0 0.0
    %274 = vmatpush1.xpose.msra.mxu0 0.0
    %275 = vmatprep.subr.mxu0 0.0
    %276 = vmatpush1.xpose.msra.mxu0 0.0
    %277 = vmatprep.subr.mxu0 0.0
    %278 = vmatpush1.xpose.msra.mxu0 0.0
    %279 = vmatprep.subr.mxu0 0.0
    %280 = vmatpush1.xpose.msra.mxu0 0.0
    %281 = vmatprep.subr.mxu0 0.0
    %282 = vmatpush1.xpose.msra.mxu0 0.0
    %283 = vmatprep.subr.mxu0 0.0
    %284 = vmatpush1.xpose.msra.mxu0 0.0
    %285 = vmatprep.subr.mxu0 0.0
    %286 = vmatpush1.xpose.msra.mxu0 0.0
    %287 = vmatprep.subr.mxu0 0.0
    %288 = vmatpush1.xpose.msra.mxu0 0.0
    %289 = vmatprep.subr.mxu0 0.0
    %290 = vmatpush1.xpose.msra.mxu0 0.0
    %291 = vmatprep.subr.mxu0 0.0
    %292 = vmatpush1.xpose.msra.mxu0 0.0
    %293 = vmatprep.subr.mxu0 0.0
    %294 = vmatpush1.xpose.msra.mxu0 0.0
    %295 = vmatprep.subr.mxu0 0.0
    %296 = vmatpush1.xpose.msra.mxu0 0.0
    %297 = vmatprep.subr.mxu0 0.0
    %298 = vmatpush1.xpose.msra.mxu0 0.0
    %299 = vmatprep.subr.mxu0 0.0
    %300 = vmatpush1.xpose.msra.mxu0 0.0
    %301 = vmatprep.subr.mxu0 0.0
    %302 = vmatpush1.xpose.msra.mxu0 0.0
    %303 = vmatprep.subr.mxu0 0.0
    %304 = vmatpush1.xpose.msra.mxu0 0.0
    %305 = vmatprep.mubr.f32.mxu0 0.0
    %306 = vmatmul.mubr.f32.gmra.mrb[0].mxu0 %v103
    %v307 = vpop.f32.mrb[0].mxu0
    %v308 = vadd.f32 0.0, %v307
    %v309 = vpop.f32.mrb[0].mxu0
    %310 = vdwg.mxu0
    %v311 = vadd.f32 %v240, %v308
    %vm312 = vcmask 128000
    %313 = vst.msk [vmem:[#allocation2] sm:$0x3f] %vm312, %v311
    // Predicated region
    $region34: #{tpu_custom_call.1} parent=1 // pred_check
      %p314 = pneg %p45
    $region35: #{tpu_custom_call.1} parent=1 // pred_check_branch
      %316 = sbr.rel (%p314) target = $region37
    $region36: #{tpu_custom_call.1} parent=1 // pred_region
      %v317 = vld [vmem:[#allocation2] sm:$0x3f]
      %v318 = vld [vmem:[%s3] sm:$0xf]
      %v319 = vlaneseq
      %v320 = vshrl.u32 %v319, 7
      %v321 = vsub.s32 0, %v320
      %v322 = vrot.slane %v317, %v321
      %v323 = vmul.f32 %v322, %v318
      %v324 = vlaneseq
      %v325 = vshrl.u32 %v324, 7
      %v326 = vsub.s32 1, %v325
      %v327 = vrot.slane %v317, %v326
      %v328 = vmul.f32 %v327, %v318
      %v329 = vlaneseq
      %v330 = vshrl.u32 %v329, 7
      %v331 = vsub.s32 2, %v330
      %v332 = vrot.slane %v317, %v331
      %v333 = vmul.f32 %v332, %v318
      %v334 = vlaneseq
      %v335 = vshrl.u32 %v334, 7
      %v336 = vsub.s32 3, %v335
      %v337 = vrot.slane %v317, %v336
      %v338 = vmul.f32 %v337, %v318
      %v339 = vlaneseq
      %v340 = vshrl.u32 %v339, 7
      %v341 = vsub.s32 4, %v340
      %v342 = vrot.slane %v317, %v341
      %v343 = vmul.f32 %v342, %v318
      %v344 = vlaneseq
      %v345 = vshrl.u32 %v344, 7
      %v346 = vsub.s32 5, %v345
      %v347 = vrot.slane %v317, %v346
      %v348 = vmul.f32 %v347, %v318
      %v350 = vrot.slane %v328, 4
      %v353 = vrot.slane %v338, 4
      %v356 = vrot.slane %v348, 4
      %v358 = vsel %vm225, %v323, %v350
      %v359 = vsel %vm225, %v333, %v353
      %v360 = vsel %vm225, %v343, %v356
      %vm361 = vcmask 130048
      %v363 = vsel %vm361, %v317, 0
      %v366 = vsel %vm361, %v358, 0
      %v369 = vsel %vm361, %v359, 0
      %v372 = vsel %vm361, %v360, 0
      %374 = vmatprep.subr.mxu0 0.0
      %375 = vmatpush1.xpose.msra.mxu0 %v366
      %376 = vmatprep.subr.mxu0 0.0
      %377 = vmatpush1.xpose.msra.mxu0 %v369
      %378 = vmatprep.subr.mxu0 0.0
      %379 = vmatpush1.xpose.msra.mxu0 %v372
      %380 = vmatprep.subr.mxu0 0.0
      %381 = vmatpush1.xpose.msra.mxu0 0.0
      %382 = vmatprep.subr.mxu0 0.0
      %383 = vmatpush1.xpose.msra.mxu0 0.0
      %384 = vmatprep.subr.mxu0 0.0
      %385 = vmatpush1.xpose.msra.mxu0 0.0
      %386 = vmatprep.subr.mxu0 0.0
      %387 = vmatpush1.xpose.msra.mxu0 0.0
      %388 = vmatprep.subr.mxu0 0.0
      %389 = vmatpush1.xpose.msra.mxu0 0.0
      %390 = vmatprep.subr.mxu0 0.0
      %391 = vmatpush1.xpose.msra.mxu0 0.0
      %392 = vmatprep.subr.mxu0 0.0
      %393 = vmatpush1.xpose.msra.mxu0 0.0
      %394 = vmatprep.subr.mxu0 0.0
      %395 = vmatpush1.xpose.msra.mxu0 0.0
      %396 = vmatprep.subr.mxu0 0.0
      %397 = vmatpush1.xpose.msra.mxu0 0.0
      %398 = vmatprep.subr.mxu0 0.0
      %399 = vmatpush1.xpose.msra.mxu0 0.0
      %400 = vmatprep.subr.mxu0 0.0
      %401 = vmatpush1.xpose.msra.mxu0 0.0
      %402 = vmatprep.subr.mxu0 0.0
      %403 = vmatpush1.xpose.msra.mxu0 0.0
      %404 = vmatprep.subr.mxu0 0.0
      %405 = vmatpush1.xpose.msra.mxu0 0.0
      %406 = vmatprep.subr.mxu0 0.0
      %407 = vmatpush1.xpose.msra.mxu0 0.0
      %408 = vmatprep.subr.mxu0 0.0
      %409 = vmatpush1.xpose.msra.mxu0 0.0
      %410 = vmatprep.subr.mxu0 0.0
      %411 = vmatpush1.xpose.msra.mxu0 0.0
      %412 = vmatprep.subr.mxu0 0.0
      %413 = vmatpush1.xpose.msra.mxu0 0.0
      %414 = vmatprep.subr.mxu0 0.0
      %415 = vmatpush1.xpose.msra.mxu0 0.0
      %416 = vmatprep.subr.mxu0 0.0
      %417 = vmatpush1.xpose.msra.mxu0 0.0
      %418 = vmatprep.subr.mxu0 0.0
      %419 = vmatpush1.xpose.msra.mxu0 0.0
      %420 = vmatprep.subr.mxu0 0.0
      %421 = vmatpush1.xpose.msra.mxu0 0.0
      %422 = vmatprep.subr.mxu0 0.0
      %423 = vmatpush1.xpose.msra.mxu0 0.0
      %424 = vmatprep.subr.mxu0 0.0
      %425 = vmatpush1.xpose.msra.mxu0 0.0
      %426 = vmatprep.subr.mxu0 0.0
      %427 = vmatpush1.xpose.msra.mxu0 0.0
      %428 = vmatprep.subr.mxu0 0.0
      %429 = vmatpush1.xpose.msra.mxu0 0.0
      %430 = vmatprep.subr.mxu0 0.0
      %431 = vmatpush1.xpose.msra.mxu0 0.0
      %432 = vmatprep.subr.mxu0 0.0
      %433 = vmatpush1.xpose.msra.mxu0 0.0
      %434 = vmatprep.subr.mxu0 0.0
      %435 = vmatpush1.xpose.msra.mxu0 0.0
      %436 = vmatprep.subr.mxu0 0.0
      %437 = vmatpush1.xpose.msra.mxu0 0.0
      %438 = vmatprep.mubr.f32.mxu0 0.0
      %439 = vmatmul.mubr.f32.gmra.mrb[0].mxu0 %v363
      %v440 = vpop.f32.mrb[0].mxu0
      %v441 = vadd.f32 0.0, %v440
      %v442 = vpop.f32.mrb[0].mxu0
      %443 = vdwg.mxu0
      %v444 = vld [vmem:[%s4] sm:$0x3f]
      %v445 = vmul.f32 %v441, %v444
      %v446 = vmul.f32 %v445, %v445
      %vm447 = vcmask 193536
      %v448 = vsel %vm447, %v446, 0.0
      %449 = vadd.xlane.f32.xlu0 %v448
      %v450 = vpop.xlane.xlu0 %449
      %v451 = vrot.slane %v450, 4
      %v452 = vadd.f32 %v450, %v451
      %v453 = vrot.slane %v452, 2
      %v454 = vadd.f32 %v452, %v453
      %v455 = vrot.slane %v454, 1
      %v456 = vadd.f32 %v454, %v455
      %s457 = vtos %v456
      %v458 = vstv %s457
      %v459 = vrsqrt.pop %v458
      %v460 = vmul.f32 %v458, %v459
      %vm461 = vcmp.eq.f32.partialorder %v458, inf
      %v462 = vsel %vm461, %v458, %v460
      %vm463 = vcmp.eq.f32.partialorder %v458, 0.0
      %v464 = vand.u32 %v458, 2147483648
      %v465 = vsel %vm463, %v464, %v462
      %v466 = vadd.f32 %v465, 1.1920929e-07
      %v467 = vrcp.pop %v466
      %v468 = vmul.f32 %v445, %v467
      %469 = vst.msk [vmem:[#allocation8] sm:$0x3f] %vm447, %v468
    $region37: #{tpu_custom_call.1} parent=1 // pred_fallthru
      _
    // Predicated region
    $region38: #{tpu_custom_call.1} parent=1 // pred_check
      _
    $region39: #{tpu_custom_call.1} parent=1 // pred_check_branch
      %471 = sbr.rel (0) target = $region41
    $region40: #{tpu_custom_call.1} parent=1 // pred_region
      %s473 = ssub.s32 128, 128
      %474 = vsyncadd [#allocation5], %s473
      %s476 = sshll.u32 [#allocation8], 4
      %s477 = int_to_ptr.vmem [resolvable:$true] %s476
      %479 = dma.vmem_to_hbm [thread:$0]  %s477, 128, %s5, [#allocation5]
    $region41: #{tpu_custom_call.1} parent=1 // pred_fallthru
      _
    // Predicated region
    $region42: #{tpu_custom_call.1} parent=1 // pred_check
      _
    $region43: #{tpu_custom_call.1} parent=1 // pred_check_branch
      %481 = sbr.rel (0) target = $region45
    $region44: #{tpu_custom_call.1} parent=1 // pred_region
      %482 = dma.done [#allocation5], 128
    $region45: #{tpu_custom_call.1} parent=1 // pred_fallthru
      _
    %483 = vsyncpa [#allocation4], 1
    %484 = vsyncpa [#allocation7], 1
    %485 = vsyncpa [#allocation5], 1

</llo_original>
